<compile_context>
chip_gen: v5e
topology: v5e:2x2
jax: 0.10.0
libtpu: 0.0.40
codegen_flags: <defaults>
</compile_context>

<pallas_src>
import functools

import jax
import jax.numpy as jnp
from jax.experimental import pallas as pl
from jax.experimental.pallas import tpu as pltpu


def _round_up(x, m):
    return (x + m - 1) // m * m


def _largest_divisor_tile(dim, unit, cap):
    """Largest multiple of `unit` that divides `dim` and is <= cap (dim itself if dim <= cap)."""
    if dim <= cap:
        return dim
    best = unit
    t = unit
    while t <= cap:
        if dim % t == 0:
            best = t
        t += unit
    return best


# ---------------------------------------------------------------------------
# One-time weight preprocessing (off the hot path, cacheable across calls):
#   W'[:, j] = 10 * W[j, :] / (||W[j, :]||_2 + 1e-5),  stored (K_pad, N_pad)
# ---------------------------------------------------------------------------
def _normalize_rows_kernel(w_ref, o_ref):
    w = w_ref[...].astype(jnp.float32)                 # (tn_p, K_pad)
    sq = jnp.sum(w * w, axis=1, keepdims=True)         # (tn_p, 1) lane reduction
    scale = 10.0 / (jnp.sqrt(sq) + 1e-5)
    # Padded (all-zero) rows would get a 1e6 scale; clamp to 0 for robustness.
    scale = jnp.where(sq > 0.0, scale, 0.0)
    o_ref[...] = (w * scale).astype(o_ref.dtype)


def prepare_weight(weight, *, compute_dtype=jnp.bfloat16):
    """One-time prep. Returns (K_pad, N_pad) `compute_dtype` weight with the
    PyTorch row-normalization and the 10x scale folded in, pre-transposed so
    the hot kernel is a single plain matmul `scores = x @ W'`.
    Cache the result and pass it back via `dist_linear(..., w_prepped=...)`.
    """
    N, K = weight.shape
    n_pad = _round_up(N, 128)
    k_pad = _round_up(K, 128)
    w_pad = jnp.pad(weight.astype(jnp.float32), ((0, n_pad - N), (0, k_pad - K)))

    itemsize = jnp.dtype(compute_dtype).itemsize
    tn_p = 128
    # (tn_p, K_pad) f32 in + compute_dtype out, double-buffered: stay << 16 MiB
    # (v5e default scoped VMEM) even for large indim by shrinking the row tile.
    if tn_p * k_pad * (4 + itemsize) * 2 > (12 << 20):
        tn_p = 8  # still divides n_pad (multiple of 128)

    w_norm = pl.pallas_call(
        _normalize_rows_kernel,
        out_shape=jax.ShapeDtypeStruct((n_pad, k_pad), compute_dtype),
        grid_spec=pltpu.PrefetchScalarGridSpec(
            num_scalar_prefetch=0,
            grid=(n_pad // tn_p,),
            in_specs=[pl.BlockSpec((tn_p, k_pad), lambda j: (j, 0))],
            out_specs=pl.BlockSpec((tn_p, k_pad), lambda j: (j, 0)),
        ),
        compiler_params=pltpu.CompilerParams(dimension_semantics=("parallel",)),
    )(w_pad)

    # One-time relayout: pre-transpose so the hot kernel needs no XLU transpose.
    return jnp.transpose(w_norm)                        # (K_pad, N_pad)


# ---------------------------------------------------------------------------
# Hot kernel: tiled  out = x @ W'   (normalization + 10x already folded into W')
# Accumulates directly into the resident f32 output block (no scratch).
# ---------------------------------------------------------------------------
def _dist_matmul_kernel(x_ref, wt_ref, o_ref):
    @pl.when(pl.program_id(2) == 0)
    def _():
        o_ref[...] = jnp.zeros_like(o_ref)

    o_ref[...] += jnp.dot(x_ref[...], wt_ref[...],
                          preferred_element_type=jnp.float32)


def dist_linear(x, weight, *, compute_dtype=jnp.bfloat16, w_prepped=None,
                max_tm=256, max_tn=1024, max_tk=1024):
    """x: (B, indim), weight: (outdim, indim) -> (B, outdim) f32 scores.

    compute_dtype: MXU operand dtype (bf16 default; accumulation always f32).
    w_prepped:     optional cached result of prepare_weight(weight, ...) so the
                   per-call path never touches the raw weight again.
    """
    M, K = x.shape
    N, K_w = weight.shape
    assert K == K_w

    n_pad = _round_up(N, 128)
    k_pad = _round_up(K, 128)

    if w_prepped is None:
        w_prepped = prepare_weight(weight, compute_dtype=compute_dtype)
    assert w_prepped.shape == (k_pad, n_pad), (w_prepped.shape, (k_pad, n_pad))
    assert w_prepped.dtype == jnp.dtype(compute_dtype)

    # Pad first, then pick tiles that divide the padded dims.
    m_pad = _round_up(M, 16)                       # 16: full sublane packing for bf16
    tm = _largest_divisor_tile(m_pad, 16, max_tm)
    tn = _largest_divisor_tile(n_pad, 128, max_tn)
    tk = _largest_divisor_tile(k_pad, 128, max_tk)

    # Keep >=2 steps on a parallel axis when possible (v7x has 2 TensorCores).
    if (m_pad // tm) * (n_pad // tn) == 1 and tn % 256 == 0:
        tn //= 2

    # Cast straight to MXU dtype, then pad (no f32 round-trip over x).
    x_mm = jnp.pad(x.astype(compute_dtype), ((0, m_pad - M), (0, k_pad - K)))

    grid = (m_pad // tm, n_pad // tn, k_pad // tk)

    itemsize = jnp.dtype(compute_dtype).itemsize
    # Double-buffered per-block footprint -> explicit, generation-safe VMEM limit.
    vmem_bytes = 2 * (tm * tk * itemsize + tk * tn * itemsize + tm * tn * 4)
    vmem_limit = min(max(int(vmem_bytes * 1.5) + (2 << 20), 16 << 20), 40 << 20)

    cost = pl.CostEstimate(
        flops=2 * m_pad * n_pad * k_pad,
        transcendentals=0,
        bytes_accessed=(m_pad * k_pad + k_pad * n_pad) * itemsize
                       + m_pad * n_pad * 4,
    )

    out_pad = pl.pallas_call(
        _dist_matmul_kernel,
        out_shape=jax.ShapeDtypeStruct((m_pad, n_pad), jnp.float32),
        grid_spec=pltpu.PrefetchScalarGridSpec(
            num_scalar_prefetch=0,
            grid=grid,
            in_specs=[
                pl.BlockSpec((tm, tk), lambda i, j, k: (i, k)),   # x
                pl.BlockSpec((tk, tn), lambda i, j, k: (k, j)),   # W' (pre-transposed)
            ],
            out_specs=pl.BlockSpec((tm, tn), lambda i, j, k: (i, j)),
        ),
        compiler_params=pltpu.CompilerParams(
            dimension_semantics=("parallel", "parallel", "arbitrary"),
            vmem_limit_bytes=vmem_limit),
        cost_estimate=cost,
    )(x_mm, w_prepped)

    return out_pad[:M, :N]


def dist_linear_ref(x, weight):
    row_norm = jnp.linalg.norm(weight, axis=1, keepdims=True)
    return 10.0 * (x @ (weight / (row_norm + 1e-5)).T)


if __name__ == "__main__":
    key = jax.random.PRNGKey(0)

    # ---- Case 1: small shapes consistent with the module (indim=32, outdim=16, batch=8).
    B, indim, outdim = 8, 32, 16
    kx, kw = jax.random.split(key)
    x = jax.random.normal(kx, (B, indim), dtype=jnp.float32)
    bound = 1.0 / (indim ** 0.5)
    weight = jax.random.uniform(kw, (outdim, indim), dtype=jnp.float32,
                                minval=-bound, maxval=bound)

    ref = dist_linear_ref(x, weight)

    # Exact-precision path (f32 MXU operands): tight semantic check vs PyTorch math.
    out_f32 = jax.block_until_ready(
        jax.jit(functools.partial(dist_linear, compute_dtype=jnp.float32))(x, weight))
    assert out_f32.shape == (B, outdim)
    assert jnp.allclose(out_f32, ref, atol=1e-3, rtol=1e-4), "f32 path mismatch"

    # Default fast path: cached prepped weight (bf16 MXU operands, f32 accumulate).
    w_prepped = jax.block_until_ready(jax.jit(prepare_weight)(weight))
    fast = jax.jit(functools.partial(dist_linear, compute_dtype=jnp.bfloat16))
    out_bf16 = jax.block_until_ready(fast(x, weight, w_prepped=w_prepped))
    assert out_bf16.shape == (B, outdim)
    rel_err = float(jnp.max(jnp.abs(out_bf16 - ref)) / (jnp.max(jnp.abs(ref)) + 1e-6))
    assert rel_err < 2e-2, f"bf16 path relative error too large: {rel_err}"

    # ---- Case 2: exercise padding, multi-step K reduction and a split j axis.
    B2, indim2, outdim2 = 24, 320, 130
    kx2, kw2 = jax.random.split(kw)
    x2 = jax.random.normal(kx2, (B2, indim2), dtype=jnp.float32)
    w2 = jax.random.normal(kw2, (outdim2, indim2), dtype=jnp.float32) * 0.05
    ref2 = dist_linear_ref(x2, w2)
    out2 = jax.block_until_ready(
        jax.jit(functools.partial(dist_linear, compute_dtype=jnp.float32,
                                  max_tk=128))(x2, w2))
    assert out2.shape == (B2, outdim2)
    assert jnp.allclose(out2, ref2, atol=5e-3, rtol=1e-3), "padded/multi-K path mismatch"

    print("KERNEL_OK")
</pallas_src>

<mosaic_0001>
module attributes {stable_mosaic.version = 11 : i64} {
  func.func @_normalize_rows_kernel(%arg0: i32, %arg1: memref<128x128xf32, #tpu.memory_space<vmem>>, %arg2: memref<128x128xf32, #tpu.memory_space<vmem>>) attributes {dimension_semantics = [#tpu.dimension_semantics<parallel>], iteration_bounds = array<i64: 1>, scalar_prefetch = 0 : i64, scratch_operands = 0 : i64, tpu.core_type = #tpu.core_type<tc>, window_params = [{transform_indices = @transform_0, window_bounds = array<i64: 128, 128>}, {transform_indices = @transform_1, window_bounds = array<i64: 128, 128>}]} {
    %c0 = arith.constant 0 : index
    %c0_0 = arith.constant 0 : index
    %0 = vector.load %arg1[%c0, %c0_0] : memref<128x128xf32, #tpu.memory_space<vmem>>, vector<128x128xf32>
    %1 = arith.mulf %0, %0 : vector<128x128xf32>
    %cst = arith.constant dense<0.000000e+00> : vector<128xf32>
    %2 = vector.multi_reduction <add>, %1, %cst [1] : vector<128x128xf32> to vector<128xf32>
    %3 = vector.shape_cast %2 : vector<128xf32> to vector<128x1xf32>
    %4 = math.sqrt %3 : vector<128x1xf32>
    %cst_1 = arith.constant 9.99999974E-6 : f32
    %5 = vector.broadcast %cst_1 : f32 to vector<128x1xf32>
    %6 = arith.addf %4, %5 : vector<128x1xf32>
    %cst_2 = arith.constant 1.000000e+01 : f32
    %7 = vector.broadcast %cst_2 : f32 to vector<128x1xf32>
    %8 = arith.divf %7, %6 : vector<128x1xf32>
    %cst_3 = arith.constant 0.000000e+00 : f32
    %9 = vector.broadcast %cst_3 : f32 to vector<128x1xf32>
    %10 = arith.cmpf ogt, %3, %9 : vector<128x1xf32>
    %cst_4 = arith.constant 0.000000e+00 : f32
    %11 = vector.broadcast %cst_4 : f32 to vector<128x1xf32>
    %12 = arith.select %10, %8, %11 : vector<128x1xi1>, vector<128x1xf32>
    %13 = vector.broadcast %12 : vector<128x1xf32> to vector<128x128xf32>
    %14 = arith.mulf %0, %13 : vector<128x128xf32>
    %c0_5 = arith.constant 0 : index
    %c0_6 = arith.constant 0 : index
    %15 = vector.load %arg2[%c0_5, %c0_6] : memref<128x128xf32, #tpu.memory_space<vmem>>, vector<128x128xf32>
    tpu.vector_store %arg2[%c0_5, %c0_6], %14 {strides = array<i32>} : memref<128x128xf32, #tpu.memory_space<vmem>>, vector<128x128xf32>,
    return
  }
  func.func @transform_0(%arg0: i32) -> (i32, i32) {
    %c0_i32 = arith.constant 0 : i32
    %c0_i32_0 = arith.constant 0 : i32
    return %arg0, %c0_i32 : i32, i32
  }
  func.func @transform_1(%arg0: i32) -> (i32, i32) {
    %c0_i32 = arith.constant 0 : i32
    %c0_i32_0 = arith.constant 0 : i32
    return %arg0, %c0_i32 : i32, i32
  }
}

module attributes {stable_mosaic.version = 11 : i64} {
  func.func @_dist_matmul_kernel(%arg0: i32, %arg1: i32, %arg2: i32, %arg3: memref<16x128xf32, #tpu.memory_space<vmem>>, %arg4: memref<128x128xf32, #tpu.memory_space<vmem>>, %arg5: memref<16x128xf32, #tpu.memory_space<vmem>>) attributes {dimension_semantics = [#tpu.dimension_semantics<parallel>, #tpu.dimension_semantics<parallel>, #tpu.dimension_semantics<arbitrary>], iteration_bounds = array<i64: 1, 1, 1>, scalar_prefetch = 0 : i64, scratch_operands = 0 : i64, tpu.core_type = #tpu.core_type<tc>, window_params = [{transform_indices = @transform_0, window_bounds = array<i64: 16, 128>}, {transform_indices = @transform_1, window_bounds = array<i64: 128, 128>}, {transform_indices = @transform_2, window_bounds = array<i64: 16, 128>}]} {
    %c0_i32 = arith.constant 0 : i32
    %0 = arith.cmpi eq, %arg2, %c0_i32 : i32
    %1 = arith.extui %0 : i1 to i32
    %c0_i32_0 = arith.constant 0 : i32
    %2 = arith.cmpi ne, %1, %c0_i32_0 : i32
    scf.if %2 {
      %cst_8 = arith.constant 0.000000e+00 : f32
      %9 = vector.broadcast %cst_8 : f32 to vector<16x128xf32>
      %c0_9 = arith.constant 0 : index
      %c0_10 = arith.constant 0 : index
      %10 = vector.load %arg5[%c0_9, %c0_10] : memref<16x128xf32, #tpu.memory_space<vmem>>, vector<16x128xf32>
      tpu.vector_store %arg5[%c0_9, %c0_10], %9 {strides = array<i32>} : memref<16x128xf32, #tpu.memory_space<vmem>>, vector<16x128xf32>,
    } else {
    }
    %c0 = arith.constant 0 : index
    %c0_1 = arith.constant 0 : index
    %3 = vector.load %arg5[%c0, %c0_1] : memref<16x128xf32, #tpu.memory_space<vmem>>, vector<16x128xf32>
    %c0_2 = arith.constant 0 : index
    %c0_3 = arith.constant 0 : index
    %4 = vector.load %arg3[%c0_2, %c0_3] : memref<16x128xf32, #tpu.memory_space<vmem>>, vector<16x128xf32>
    %c0_4 = arith.constant 0 : index
    %c0_5 = arith.constant 0 : index
    %5 = vector.load %arg4[%c0_4, %c0_5] : memref<128x128xf32, #tpu.memory_space<vmem>>, vector<128x128xf32>
    %cst = arith.constant dense<0.000000e+00> : vector<16x128xf32>
    %6 = tpu.matmul %4, %5, %cst {dimension_numbers = #tpu.dot_dimension_numbers<[1], [0], [0], [1], [0, 0, 1, 1], [], []>} : vector<16x128xf32>, vector<128x128xf32>, vector<16x128xf32> -> vector<16x128xf32>
    %7 = arith.addf %3, %6 : vector<16x128xf32>
    %c0_6 = arith.constant 0 : index
    %c0_7 = arith.constant 0 : index
    %8 = vector.load %arg5[%c0_6, %c0_7] : memref<16x128xf32, #tpu.memory_space<vmem>>, vector<16x128xf32>
    tpu.vector_store %arg5[%c0_6, %c0_7], %7 {strides = array<i32>} : memref<16x128xf32, #tpu.memory_space<vmem>>, vector<16x128xf32>,
    return
  }
  func.func @transform_0(%arg0: i32, %arg1: i32, %arg2: i32) -> (i32, i32) {
    %c0_i32 = arith.constant 0 : i32
    return %arg0, %arg2 : i32, i32
  }
  func.func @transform_1(%arg0: i32, %arg1: i32, %arg2: i32) -> (i32, i32) {
    %c0_i32 = arith.constant 0 : i32
    return %arg2, %arg1 : i32, i32
  }
  func.func @transform_2(%arg0: i32, %arg1: i32, %arg2: i32) -> (i32, i32) {
    %c0_i32 = arith.constant 0 : i32
    return %arg0, %arg1 : i32, i32
  }
}

</mosaic_0001>

<llo_original>
// kernel: dist_linear.2
$region0: #{dist_linear.2}
  #allocation0 [shape = 'u32[]', space=smem, size = 0x4, offset = 0x4, fixed_abs, tag = 'smem constant byte address 0x4 - core index']
  #allocation1 [shape = 'u32[72,128]{1,0:T(1,128)}', space=vmem, size = 0x9000, scoped, tag = 'internal scratch']
  %s0 = inlined_call_operand.vmem [shape: f32[128,128], index: 0, kind: input, shape index: {}]
  %s1 = inlined_call_operand.vmem [shape: f32[128,128], index: 1, kind: output, shape index: {}]
  %s2 = sld [smem:[#allocation0]]
  $region14: #{dist_linear.2} parent=0
    _
  %s4 = ssub.s32 1, %s2
  %s5 = scalar_select 0, %s4, %s2
  // Predicated region
  $region2: #{dist_linear.2} parent=0 // pred_check
    _
  $region3: #{dist_linear.2} parent=0 // pred_check_branch
    %7 = sbr.rel (0) target = $region5
  $region4: #{dist_linear.2} parent=0 // pred_region
    _
  $region5: #{dist_linear.2} parent=0 // pred_fallthru
    _
  %v8 = vld [vmem:[%s0] sm:$0xff]
  %v9 = vld [vmem:[%s0 + $0x8] sm:$0xff]
  %v10 = vld [vmem:[%s0 + $0x10] sm:$0xff]
  %v11 = vld [vmem:[%s0 + $0x18] sm:$0xff]
  %v12 = vld [vmem:[%s0 + $0x20] sm:$0xff]
  %v13 = vld [vmem:[%s0 + $0x28] sm:$0xff]
  %v14 = vld [vmem:[%s0 + $0x30] sm:$0xff]
  %v15 = vld [vmem:[%s0 + $0x38] sm:$0xff]
  %v16 = vld [vmem:[%s0 + $0x40] sm:$0xff]
  %v17 = vld [vmem:[%s0 + $0x48] sm:$0xff]
  %v18 = vld [vmem:[%s0 + $0x50] sm:$0xff]
  %v19 = vld [vmem:[%s0 + $0x58] sm:$0xff]
  %v20 = vld [vmem:[%s0 + $0x60] sm:$0xff]
  %v21 = vld [vmem:[%s0 + $0x68] sm:$0xff]
  %v22 = vld [vmem:[%s0 + $0x70] sm:$0xff]
  %v23 = vld [vmem:[%s0 + $0x78] sm:$0xff]
  %v24 = vmul.f32 %v8, %v8
  %v25 = vmul.f32 %v9, %v9
  %v26 = vmul.f32 %v10, %v10
  %v27 = vmul.f32 %v11, %v11
  %v28 = vmul.f32 %v12, %v12
  %v29 = vmul.f32 %v13, %v13
  %v30 = vmul.f32 %v14, %v14
  %v31 = vmul.f32 %v15, %v15
  %v32 = vmul.f32 %v16, %v16
  %v33 = vmul.f32 %v17, %v17
  %v34 = vmul.f32 %v18, %v18
  %v35 = vmul.f32 %v19, %v19
  %v36 = vmul.f32 %v20, %v20
  %v37 = vmul.f32 %v21, %v21
  %v38 = vmul.f32 %v22, %v22
  %v39 = vmul.f32 %v23, %v23
  %40 = vadd.xlane.f32.xlu0 %v24
  %v41 = vpop.xlane.xlu0 %40
  %42 = vadd.xlane.f32.xlu0 %v25
  %v43 = vpop.xlane.xlu0 %42
  %44 = vadd.xlane.f32.xlu0 %v26
  %v45 = vpop.xlane.xlu0 %44
  %46 = vadd.xlane.f32.xlu0 %v27
  %v47 = vpop.xlane.xlu0 %46
  %48 = vadd.xlane.f32.xlu0 %v28
  %v49 = vpop.xlane.xlu0 %48
  %50 = vadd.xlane.f32.xlu0 %v29
  %v51 = vpop.xlane.xlu0 %50
  %52 = vadd.xlane.f32.xlu0 %v30
  %v53 = vpop.xlane.xlu0 %52
  %54 = vadd.xlane.f32.xlu0 %v31
  %v55 = vpop.xlane.xlu0 %54
  %56 = vadd.xlane.f32.xlu0 %v32
  %v57 = vpop.xlane.xlu0 %56
  %58 = vadd.xlane.f32.xlu0 %v33
  %v59 = vpop.xlane.xlu0 %58
  %60 = vadd.xlane.f32.xlu0 %v34
  %v61 = vpop.xlane.xlu0 %60
  %62 = vadd.xlane.f32.xlu0 %v35
  %v63 = vpop.xlane.xlu0 %62
  %64 = vadd.xlane.f32.xlu0 %v36
  %v65 = vpop.xlane.xlu0 %64
  %66 = vadd.xlane.f32.xlu0 %v37
  %v67 = vpop.xlane.xlu0 %66
  %68 = vadd.xlane.f32.xlu0 %v38
  %v69 = vpop.xlane.xlu0 %68
  %70 = vadd.xlane.f32.xlu0 %v39
  %v71 = vpop.xlane.xlu0 %70
  %v72 = vrsqrt.pop %v41
  %v73 = vmul.f32 %v72, %v41
  %v74 = vmul.f32 %v73, %v72
  %v75 = vmul.f32 0.5, %v74
  %v76 = vsub.f32 1.5, %v75
  %v77 = vmul.f32 %v72, %v76
  %v78 = vmul.f32 %v41, %v77
  %vm79 = vcmp.eq.f32.partialorder %v41, inf
  %v80 = vsel %vm79, %v41, %v78
  %vm81 = vcmp.eq.f32.partialorder %v41, 0.0
  %v82 = vand.u32 %v41, 2147483648
  %v83 = vsel %vm81, %v82, %v80
  %v84 = vrsqrt.pop %v43
  %v85 = vmul.f32 %v84, %v43
  %v86 = vmul.f32 %v85, %v84
  %v87 = vmul.f32 0.5, %v86
  %v88 = vsub.f32 1.5, %v87
  %v89 = vmul.f32 %v84, %v88
  %v90 = vmul.f32 %v43, %v89
  %vm91 = vcmp.eq.f32.partialorder %v43, inf
  %v92 = vsel %vm91, %v43, %v90
  %vm93 = vcmp.eq.f32.partialorder %v43, 0.0
  %v94 = vand.u32 %v43, 2147483648
  %v95 = vsel %vm93, %v94, %v92
  %v96 = vrsqrt.pop %v45
  %v97 = vmul.f32 %v96, %v45
  %v98 = vmul.f32 %v97, %v96
  %v99 = vmul.f32 0.5, %v98
  %v100 = vsub.f32 1.5, %v99
  %v101 = vmul.f32 %v96, %v100
  %v102 = vmul.f32 %v45, %v101
  %vm103 = vcmp.eq.f32.partialorder %v45, inf
  %v104 = vsel %vm103, %v45, %v102
  %vm105 = vcmp.eq.f32.partialorder %v45, 0.0
  %v106 = vand.u32 %v45, 2147483648
  %v107 = vsel %vm105, %v106, %v104
  %v108 = vrsqrt.pop %v47
  %v109 = vmul.f32 %v108, %v47
  %v110 = vmul.f32 %v109, %v108
  %v111 = vmul.f32 0.5, %v110
  %v112 = vsub.f32 1.5, %v111
  %v113 = vmul.f32 %v108, %v112
  %v114 = vmul.f32 %v47, %v113
  %vm115 = vcmp.eq.f32.partialorder %v47, inf
  %v116 = vsel %vm115, %v47, %v114
  %vm117 = vcmp.eq.f32.partialorder %v47, 0.0
  %v118 = vand.u32 %v47, 2147483648
  %v119 = vsel %vm117, %v118, %v116
  %v120 = vrsqrt.pop %v49
  %v121 = vmul.f32 %v120, %v49
  %v122 = vmul.f32 %v121, %v120
  %v123 = vmul.f32 0.5, %v122
  %v124 = vsub.f32 1.5, %v123
  %v125 = vmul.f32 %v120, %v124
  %v126 = vmul.f32 %v49, %v125
  %vm127 = vcmp.eq.f32.partialorder %v49, inf
  %v128 = vsel %vm127, %v49, %v126
  %vm129 = vcmp.eq.f32.partialorder %v49, 0.0
  %v130 = vand.u32 %v49, 2147483648
  %v131 = vsel %vm129, %v130, %v128
  %v132 = vrsqrt.pop %v51
  %v133 = vmul.f32 %v132, %v51
  %v134 = vmul.f32 %v133, %v132
  %v135 = vmul.f32 0.5, %v134
  %v136 = vsub.f32 1.5, %v135
  %v137 = vmul.f32 %v132, %v136
  %v138 = vmul.f32 %v51, %v137
  %vm139 = vcmp.eq.f32.partialorder %v51, inf
  %v140 = vsel %vm139, %v51, %v138
  %vm141 = vcmp.eq.f32.partialorder %v51, 0.0
  %v142 = vand.u32 %v51, 2147483648
  %v143 = vsel %vm141, %v142, %v140
  %v144 = vrsqrt.pop %v53
  %v145 = vmul.f32 %v144, %v53
  %v146 = vmul.f32 %v145, %v144
  %v147 = vmul.f32 0.5, %v146
  %v148 = vsub.f32 1.5, %v147
  %v149 = vmul.f32 %v144, %v148
  %v150 = vmul.f32 %v53, %v149
  %vm151 = vcmp.eq.f32.partialorder %v53, inf
  %v152 = vsel %vm151, %v53, %v150
  %vm153 = vcmp.eq.f32.partialorder %v53, 0.0
  %v154 = vand.u32 %v53, 2147483648
  %v155 = vsel %vm153, %v154, %v152
  %v156 = vrsqrt.pop %v55
  %v157 = vmul.f32 %v156, %v55
  %v158 = vmul.f32 %v157, %v156
  %v159 = vmul.f32 0.5, %v158
  %v160 = vsub.f32 1.5, %v159
  %v161 = vmul.f32 %v156, %v160
  %v162 = vmul.f32 %v55, %v161
  %vm163 = vcmp.eq.f32.partialorder %v55, inf
  %v164 = vsel %vm163, %v55, %v162
  %vm165 = vcmp.eq.f32.partialorder %v55, 0.0
  %v166 = vand.u32 %v55, 2147483648
  %v167 = vsel %vm165, %v166, %v164
  %v168 = vrsqrt.pop %v57
  %v169 = vmul.f32 %v168, %v57
  %v170 = vmul.f32 %v169, %v168
  %v171 = vmul.f32 0.5, %v170
  %v172 = vsub.f32 1.5, %v171
  %v173 = vmul.f32 %v168, %v172
  %v174 = vmul.f32 %v57, %v173
  %vm175 = vcmp.eq.f32.partialorder %v57, inf
  %v176 = vsel %vm175, %v57, %v174
  %vm177 = vcmp.eq.f32.partialorder %v57, 0.0
  %v178 = vand.u32 %v57, 2147483648
  %v179 = vsel %vm177, %v178, %v176
  %v180 = vrsqrt.pop %v59
  %v181 = vmul.f32 %v180, %v59
  %v182 = vmul.f32 %v181, %v180
  %v183 = vmul.f32 0.5, %v182
  %v184 = vsub.f32 1.5, %v183
  %v185 = vmul.f32 %v180, %v184
  %v186 = vmul.f32 %v59, %v185
  %vm187 = vcmp.eq.f32.partialorder %v59, inf
  %v188 = vsel %vm187, %v59, %v186
  %vm189 = vcmp.eq.f32.partialorder %v59, 0.0
  %v190 = vand.u32 %v59, 2147483648
  %v191 = vsel %vm189, %v190, %v188
  %v192 = vrsqrt.pop %v61
  %v193 = vmul.f32 %v192, %v61
  %v194 = vmul.f32 %v193, %v192
  %v195 = vmul.f32 0.5, %v194
  %v196 = vsub.f32 1.5, %v195
  %v197 = vmul.f32 %v192, %v196
  %v198 = vmul.f32 %v61, %v197
  %vm199 = vcmp.eq.f32.partialorder %v61, inf
  %v200 = vsel %vm199, %v61, %v198
  %vm201 = vcmp.eq.f32.partialorder %v61, 0.0
  %v202 = vand.u32 %v61, 2147483648
  %v203 = vsel %vm201, %v202, %v200
  %v204 = vrsqrt.pop %v63
  %v205 = vmul.f32 %v204, %v63
  %v206 = vmul.f32 %v205, %v204
  %v207 = vmul.f32 0.5, %v206
  %v208 = vsub.f32 1.5, %v207
  %v209 = vmul.f32 %v204, %v208
  %v210 = vmul.f32 %v63, %v209
  %vm211 = vcmp.eq.f32.partialorder %v63, inf
  %v212 = vsel %vm211, %v63, %v210
  %vm213 = vcmp.eq.f32.partialorder %v63, 0.0
  %v214 = vand.u32 %v63, 2147483648
  %v215 = vsel %vm213, %v214, %v212
  %v216 = vrsqrt.pop %v65
  %v217 = vmul.f32 %v216, %v65
  %v218 = vmul.f32 %v217, %v216
  %v219 = vmul.f32 0.5, %v218
  %v220 = vsub.f32 1.5, %v219
  %v221 = vmul.f32 %v216, %v220
  %v222 = vmul.f32 %v65, %v221
  %vm223 = vcmp.eq.f32.partialorder %v65, inf
  %v224 = vsel %vm223, %v65, %v222
  %vm225 = vcmp.eq.f32.partialorder %v65, 0.0
  %v226 = vand.u32 %v65, 2147483648
  %v227 = vsel %vm225, %v226, %v224
  %v228 = vrsqrt.pop %v67
  %v229 = vmul.f32 %v228, %v67
  %v230 = vmul.f32 %v229, %v228
  %v231 = vmul.f32 0.5, %v230
  %v232 = vsub.f32 1.5, %v231
  %v233 = vmul.f32 %v228, %v232
  %v234 = vmul.f32 %v67, %v233
  %vm235 = vcmp.eq.f32.partialorder %v67, inf
  %v236 = vsel %vm235, %v67, %v234
  %vm237 = vcmp.eq.f32.partialorder %v67, 0.0
  %v238 = vand.u32 %v67, 2147483648
  %v239 = vsel %vm237, %v238, %v236
  %v240 = vrsqrt.pop %v69
  %v241 = vmul.f32 %v240, %v69
  %v242 = vmul.f32 %v241, %v240
  %v243 = vmul.f32 0.5, %v242
  %v244 = vsub.f32 1.5, %v243
  %v245 = vmul.f32 %v240, %v244
  %v246 = vmul.f32 %v69, %v245
  %vm247 = vcmp.eq.f32.partialorder %v69, inf
  %v248 = vsel %vm247, %v69, %v246
  %vm249 = vcmp.eq.f32.partialorder %v69, 0.0
  %v250 = vand.u32 %v69, 2147483648
  %v251 = vsel %vm249, %v250, %v248
  %v252 = vrsqrt.pop %v71
  %v253 = vmul.f32 %v252, %v71
  %v254 = vmul.f32 %v253, %v252
  %v255 = vmul.f32 0.5, %v254
  %v256 = vsub.f32 1.5, %v255
  %v257 = vmul.f32 %v252, %v256
  %v258 = vmul.f32 %v71, %v257
  %vm259 = vcmp.eq.f32.partialorder %v71, inf
  %v260 = vsel %vm259, %v71, %v258
  %vm261 = vcmp.eq.f32.partialorder %v71, 0.0
  %v262 = vand.u32 %v71, 2147483648
  %v263 = vsel %vm261, %v262, %v260
  %v264 = vadd.f32 %v83, 1e-05
  %v265 = vadd.f32 %v95, 1e-05
  %v266 = vadd.f32 %v107, 1e-05
  %v267 = vadd.f32 %v119, 1e-05
  %v268 = vadd.f32 %v131, 1e-05
  %v269 = vadd.f32 %v143, 1e-05
  %v270 = vadd.f32 %v155, 1e-05
  %v271 = vadd.f32 %v167, 1e-05
  %v272 = vadd.f32 %v179, 1e-05
  %v273 = vadd.f32 %v191, 1e-05
  %v274 = vadd.f32 %v203, 1e-05
  %v275 = vadd.f32 %v215, 1e-05
  %v276 = vadd.f32 %v227, 1e-05
  %v277 = vadd.f32 %v239, 1e-05
  %v278 = vadd.f32 %v251, 1e-05
  %v279 = vadd.f32 %v263, 1e-05
  %v280 = vrcp.pop %v264
  %v281 = vmul.f32 %v264, %v280
  %v282 = vsub.f32 1.0, %v281
  %v283 = vmul.f32 %v280, %v282
  %v284 = vadd.f32 %v280, %v283
  %vm285 = vweird.f32 %v264
  %vm286 = vweird.f32 %v280
  %vm287 = vmor %vm285, %vm286
  %v288 = vsel %vm287, %v280, %v284
  %v289 = vand.u32 2147483647, %v264
  %vm290 = vcmp.eq.f32.partialorder %v289, 8.507059e+37
  %v291 = vand.u32 %v264, 2147483648
  %v292 = vor.u32 1.1754944e-38, %v291
  %v293 = vsel %vm290, %v292, %v288
  %v294 = vmul.f32 10.0, %v293
  %v295 = vrcp.pop %v265
  %v296 = vmul.f32 %v265, %v295
  %v297 = vsub.f32 1.0, %v296
  %v298 = vmul.f32 %v295, %v297
  %v299 = vadd.f32 %v295, %v298
  %vm300 = vweird.f32 %v265
  %vm301 = vweird.f32 %v295
  %vm302 = vmor %vm300, %vm301
  %v303 = vsel %vm302, %v295, %v299
  %v304 = vand.u32 2147483647, %v265
  %vm305 = vcmp.eq.f32.partialorder %v304, 8.507059e+37
  %v306 = vand.u32 %v265, 2147483648
  %v307 = vor.u32 1.1754944e-38, %v306
  %v308 = vsel %vm305, %v307, %v303
  %v309 = vmul.f32 10.0, %v308
  %v310 = vrcp.pop %v266
  %v311 = vmul.f32 %v266, %v310
  %v312 = vsub.f32 1.0, %v311
  %v313 = vmul.f32 %v310, %v312
  %v314 = vadd.f32 %v310, %v313
  %vm315 = vweird.f32 %v266
  %vm316 = vweird.f32 %v310
  %vm317 = vmor %vm315, %vm316
  %v318 = vsel %vm317, %v310, %v314
  %v319 = vand.u32 2147483647, %v266
  %vm320 = vcmp.eq.f32.partialorder %v319, 8.507059e+37
  %v321 = vand.u32 %v266, 2147483648
  %v322 = vor.u32 1.1754944e-38, %v321
  %v323 = vsel %vm320, %v322, %v318
  %v324 = vmul.f32 10.0, %v323
  %v325 = vrcp.pop %v267
  %v326 = vmul.f32 %v267, %v325
  %v327 = vsub.f32 1.0, %v326
  %v328 = vmul.f32 %v325, %v327
  %v329 = vadd.f32 %v325, %v328
  %vm330 = vweird.f32 %v267
  %vm331 = vweird.f32 %v325
  %vm332 = vmor %vm330, %vm331
  %v333 = vsel %vm332, %v325, %v329
  %v334 = vand.u32 2147483647, %v267
  %vm335 = vcmp.eq.f32.partialorder %v334, 8.507059e+37
  %v336 = vand.u32 %v267, 2147483648
  %v337 = vor.u32 1.1754944e-38, %v336
  %v338 = vsel %vm335, %v337, %v333
  %v339 = vmul.f32 10.0, %v338
  %v340 = vrcp.pop %v268
  %v341 = vmul.f32 %v268, %v340
  %v342 = vsub.f32 1.0, %v341
  %v343 = vmul.f32 %v340, %v342
  %v344 = vadd.f32 %v340, %v343
  %vm345 = vweird.f32 %v268
  %vm346 = vweird.f32 %v340
  %vm347 = vmor %vm345, %vm346
  %v348 = vsel %vm347, %v340, %v344
  %v349 = vand.u32 2147483647, %v268
  %vm350 = vcmp.eq.f32.partialorder %v349, 8.507059e+37
  %v351 = vand.u32 %v268, 2147483648
  %v352 = vor.u32 1.1754944e-38, %v351
  %v353 = vsel %vm350, %v352, %v348
  %v354 = vmul.f32 10.0, %v353
  %v355 = vrcp.pop %v269
  %v356 = vmul.f32 %v269, %v355
  %v357 = vsub.f32 1.0, %v356
  %v358 = vmul.f32 %v355, %v357
  %v359 = vadd.f32 %v355, %v358
  %vm360 = vweird.f32 %v269
  %vm361 = vweird.f32 %v355
  %vm362 = vmor %vm360, %vm361
  %v363 = vsel %vm362, %v355, %v359
  %v364 = vand.u32 2147483647, %v269
  %vm365 = vcmp.eq.f32.partialorder %v364, 8.507059e+37
  %v366 = vand.u32 %v269, 2147483648
  %v367 = vor.u32 1.1754944e-38, %v366
  %v368 = vsel %vm365, %v367, %v363
  %v369 = vmul.f32 10.0, %v368
  %v370 = vrcp.pop %v270
  %v371 = vmul.f32 %v270, %v370
  %v372 = vsub.f32 1.0, %v371
  %v373 = vmul.f32 %v370, %v372
  %v374 = vadd.f32 %v370, %v373
  %vm375 = vweird.f32 %v270
  %vm376 = vweird.f32 %v370
  %vm377 = vmor %vm375, %vm376
  %v378 = vsel %vm377, %v370, %v374
  %v379 = vand.u32 2147483647, %v270
  %vm380 = vcmp.eq.f32.partialorder %v379, 8.507059e+37
  %v381 = vand.u32 %v270, 2147483648
  %v382 = vor.u32 1.1754944e-38, %v381
  %v383 = vsel %vm380, %v382, %v378
  %v384 = vmul.f32 10.0, %v383
  %v385 = vrcp.pop %v271
  %v386 = vmul.f32 %v271, %v385
  %v387 = vsub.f32 1.0, %v386
  %v388 = vmul.f32 %v385, %v387
  %v389 = vadd.f32 %v385, %v388
  %vm390 = vweird.f32 %v271
  %vm391 = vweird.f32 %v385
  %vm392 = vmor %vm390, %vm391
  %v393 = vsel %vm392, %v385, %v389
  %v394 = vand.u32 2147483647, %v271
  %vm395 = vcmp.eq.f32.partialorder %v394, 8.507059e+37
  %v396 = vand.u32 %v271, 2147483648
  %v397 = vor.u32 1.1754944e-38, %v396
  %v398 = vsel %vm395, %v397, %v393
  %v399 = vmul.f32 10.0, %v398
  %v400 = vrcp.pop %v272
  %v401 = vmul.f32 %v272, %v400
  %v402 = vsub.f32 1.0, %v401
  %v403 = vmul.f32 %v400, %v402
  %v404 = vadd.f32 %v400, %v403
  %vm405 = vweird.f32 %v272
  %vm406 = vweird.f32 %v400
  %vm407 = vmor %vm405, %vm406
  %v408 = vsel %vm407, %v400, %v404
  %v409 = vand.u32 2147483647, %v272
  %vm410 = vcmp.eq.f32.partialorder %v409, 8.507059e+37
  %v411 = vand.u32 %v272, 2147483648
  %v412 = vor.u32 1.1754944e-38, %v411
  %v413 = vsel %vm410, %v412, %v408
  %v414 = vmul.f32 10.0, %v413
  %v415 = vrcp.pop %v273
  %v416 = vmul.f32 %v273, %v415
  %v417 = vsub.f32 1.0, %v416
  %v418 = vmul.f32 %v415, %v417
  %v419 = vadd.f32 %v415, %v418
  %vm420 = vweird.f32 %v273
  %vm421 = vweird.f32 %v415
  %vm422 = vmor %vm420, %vm421
  %v423 = vsel %vm422, %v415, %v419
  %v424 = vand.u32 2147483647, %v273
  %vm425 = vcmp.eq.f32.partialorder %v424, 8.507059e+37
  %v426 = vand.u32 %v273, 2147483648
  %v427 = vor.u32 1.1754944e-38, %v426
  %v428 = vsel %vm425, %v427, %v423
  %v429 = vmul.f32 10.0, %v428
  %v430 = vrcp.pop %v274
  %v431 = vmul.f32 %v274, %v430
  %v432 = vsub.f32 1.0, %v431
  %v433 = vmul.f32 %v430, %v432
  %v434 = vadd.f32 %v430, %v433
  %vm435 = vweird.f32 %v274
  %vm436 = vweird.f32 %v430
  %vm437 = vmor %vm435, %vm436
  %v438 = vsel %vm437, %v430, %v434
  %v439 = vand.u32 2147483647, %v274
  %vm440 = vcmp.eq.f32.partialorder %v439, 8.507059e+37
  %v441 = vand.u32 %v274, 2147483648
  %v442 = vor.u32 1.1754944e-38, %v441
  %v443 = vsel %vm440, %v442, %v438
  %v444 = vmul.f32 10.0, %v443
  %v445 = vrcp.pop %v275
  %v446 = vmul.f32 %v275, %v445
  %v447 = vsub.f32 1.0, %v446
  %v448 = vmul.f32 %v445, %v447
  %v449 = vadd.f32 %v445, %v448
  %vm450 = vweird.f32 %v275
  %vm451 = vweird.f32 %v445
  %vm452 = vmor %vm450, %vm451
  %v453 = vsel %vm452, %v445, %v449
  %v454 = vand.u32 2147483647, %v275
  %vm455 = vcmp.eq.f32.partialorder %v454, 8.507059e+37
  %v456 = vand.u32 %v275, 2147483648
  %v457 = vor.u32 1.1754944e-38, %v456
  %v458 = vsel %vm455, %v457, %v453
  %v459 = vmul.f32 10.0, %v458
  %v460 = vrcp.pop %v276
  %v461 = vmul.f32 %v276, %v460
  %v462 = vsub.f32 1.0, %v461
  %v463 = vmul.f32 %v460, %v462
  %v464 = vadd.f32 %v460, %v463
  %vm465 = vweird.f32 %v276
  %vm466 = vweird.f32 %v460
  %vm467 = vmor %vm465, %vm466
  %v468 = vsel %vm467, %v460, %v464
  %v469 = vand.u32 2147483647, %v276
  %vm470 = vcmp.eq.f32.partialorder %v469, 8.507059e+37
  %v471 = vand.u32 %v276, 2147483648
  %v472 = vor.u32 1.1754944e-38, %v471
  %v473 = vsel %vm470, %v472, %v468
  %v474 = vmul.f32 10.0, %v473
  %v475 = vrcp.pop %v277
  %v476 = vmul.f32 %v277, %v475
  %v477 = vsub.f32 1.0, %v476
  %v478 = vmul.f32 %v475, %v477
  %v479 = vadd.f32 %v475, %v478
  %vm480 = vweird.f32 %v277
  %vm481 = vweird.f32 %v475
  %vm482 = vmor %vm480, %vm481
  %v483 = vsel %vm482, %v475, %v479
  %v484 = vand.u32 2147483647, %v277
  %vm485 = vcmp.eq.f32.partialorder %v484, 8.507059e+37
  %v486 = vand.u32 %v277, 2147483648
  %v487 = vor.u32 1.1754944e-38, %v486
  %v488 = vsel %vm485, %v487, %v483
  %v489 = vmul.f32 10.0, %v488
  %v490 = vrcp.pop %v278
  %v491 = vmul.f32 %v278, %v490
  %v492 = vsub.f32 1.0, %v491
  %v493 = vmul.f32 %v490, %v492
  %v494 = vadd.f32 %v490, %v493
  %vm495 = vweird.f32 %v278
  %vm496 = vweird.f32 %v490
  %vm497 = vmor %vm495, %vm496
  %v498 = vsel %vm497, %v490, %v494
  %v499 = vand.u32 2147483647, %v278
  %vm500 = vcmp.eq.f32.partialorder %v499, 8.507059e+37
  %v501 = vand.u32 %v278, 2147483648
  %v502 = vor.u32 1.1754944e-38, %v501
  %v503 = vsel %vm500, %v502, %v498
  %v504 = vmul.f32 10.0, %v503
  %v505 = vrcp.pop %v279
  %v506 = vmul.f32 %v279, %v505
  %v507 = vsub.f32 1.0, %v506
  %v508 = vmul.f32 %v505, %v507
  %v509 = vadd.f32 %v505, %v508
  %vm510 = vweird.f32 %v279
  %vm511 = vweird.f32 %v505
  %vm512 = vmor %vm510, %vm511
  %v513 = vsel %vm512, %v505, %v509
  %v514 = vand.u32 2147483647, %v279
  %vm515 = vcmp.eq.f32.partialorder %v514, 8.507059e+37
  %v516 = vand.u32 %v279, 2147483648
  %v517 = vor.u32 1.1754944e-38, %v516
  %v518 = vsel %vm515, %v517, %v513
  %v519 = vmul.f32 10.0, %v518
  %vm520 = vcmp.gt.f32.partialorder %v41, 0.0
  %vm521 = vcmp.gt.f32.partialorder %v43, 0.0
  %vm522 = vcmp.gt.f32.partialorder %v45, 0.0
  %vm523 = vcmp.gt.f32.partialorder %v47, 0.0
  %vm524 = vcmp.gt.f32.partialorder %v49, 0.0
  %vm525 = vcmp.gt.f32.partialorder %v51, 0.0
  %vm526 = vcmp.gt.f32.partialorder %v53, 0.0
  %vm527 = vcmp.gt.f32.partialorder %v55, 0.0
  %vm528 = vcmp.gt.f32.partialorder %v57, 0.0
  %vm529 = vcmp.gt.f32.partialorder %v59, 0.0
  %vm530 = vcmp.gt.f32.partialorder %v61, 0.0
  %vm531 = vcmp.gt.f32.partialorder %v63, 0.0
  %vm532 = vcmp.gt.f32.partialorder %v65, 0.0
  %vm533 = vcmp.gt.f32.partialorder %v67, 0.0
  %vm534 = vcmp.gt.f32.partialorder %v69, 0.0
  %vm535 = vcmp.gt.f32.partialorder %v71, 0.0
  %v536 = vsel %vm520, %v294, 0.0
  %v537 = vsel %vm521, %v309, 0.0
  %v538 = vsel %vm522, %v324, 0.0
  %v539 = vsel %vm523, %v339, 0.0
  %v540 = vsel %vm524, %v354, 0.0
  %v541 = vsel %vm525, %v369, 0.0
  %v542 = vsel %vm526, %v384, 0.0
  %v543 = vsel %vm527, %v399, 0.0
  %v544 = vsel %vm528, %v414, 0.0
  %v545 = vsel %vm529, %v429, 0.0
  %v546 = vsel %vm530, %v444, 0.0
  %v547 = vsel %vm531, %v459, 0.0
  %v548 = vsel %vm532, %v474, 0.0
  %v549 = vsel %vm533, %v489, 0.0
  %v550 = vsel %vm534, %v504, 0.0
  %v551 = vsel %vm535, %v519, 0.0
  %v552 = vmul.f32 %v8, %v536
  %v553 = vmul.f32 %v9, %v537
  %v554 = vmul.f32 %v10, %v538
  %v555 = vmul.f32 %v11, %v539
  %v556 = vmul.f32 %v12, %v540
  %v557 = vmul.f32 %v13, %v541
  %v558 = vmul.f32 %v14, %v542
  %v559 = vmul.f32 %v15, %v543
  %v560 = vmul.f32 %v16, %v544
  %v561 = vmul.f32 %v17, %v545
  %v562 = vmul.f32 %v18, %v546
  %v563 = vmul.f32 %v19, %v547
  %v564 = vmul.f32 %v20, %v548
  %v565 = vmul.f32 %v21, %v549
  %v566 = vmul.f32 %v22, %v550
  %v567 = vmul.f32 %v23, %v551
  %568 = vst [vmem:[%s1] sm:$0xff] %v552
  %569 = vst [vmem:[%s1 + $0x8] sm:$0xff] %v553
  %570 = vst [vmem:[%s1 + $0x10] sm:$0xff] %v554
  %571 = vst [vmem:[%s1 + $0x18] sm:$0xff] %v555
  %572 = vst [vmem:[%s1 + $0x20] sm:$0xff] %v556
  %573 = vst [vmem:[%s1 + $0x28] sm:$0xff] %v557
  %574 = vst [vmem:[%s1 + $0x30] sm:$0xff] %v558
  %575 = vst [vmem:[%s1 + $0x38] sm:$0xff] %v559
  %576 = vst [vmem:[%s1 + $0x40] sm:$0xff] %v560
  %577 = vst [vmem:[%s1 + $0x48] sm:$0xff] %v561
  %578 = vst [vmem:[%s1 + $0x50] sm:$0xff] %v562
  %579 = vst [vmem:[%s1 + $0x58] sm:$0xff] %v563
  %580 = vst [vmem:[%s1 + $0x60] sm:$0xff] %v564
  %581 = vst [vmem:[%s1 + $0x68] sm:$0xff] %v565
  %582 = vst [vmem:[%s1 + $0x70] sm:$0xff] %v566
  %583 = vst [vmem:[%s1 + $0x78] sm:$0xff] %v567
  // Predicated region
  $region6: #{dist_linear.2} parent=0 // pred_check
    _
  $region7: #{dist_linear.2} parent=0 // pred_check_branch
    %585 = sbr.rel (0) target = $region9
  $region8: #{dist_linear.2} parent=0 // pred_region
    _
  $region9: #{dist_linear.2} parent=0 // pred_fallthru
    _
  // Predicated region
  $region10: #{dist_linear.2} parent=0 // pred_check
    _
  $region11: #{dist_linear.2} parent=0 // pred_check_branch
    %587 = sbr.rel (0) target = $region13
  $region12: #{dist_linear.2} parent=0 // pred_region
    _
  $region13: #{dist_linear.2} parent=0 // pred_fallthru
    _

// kernel: dist_linear.3
$region0: #{dist_linear.3}
  #allocation0 [shape = 'u32[]', space=smem, size = 0x4, offset = 0x4, fixed_abs, tag = 'smem constant byte address 0x4 - core index']
  #allocation1 [shape = 'u32[72,128]{1,0:T(1,128)}', space=vmem, size = 0x9000, scoped, tag = 'internal scratch']
  %s0 = inlined_call_operand.vmem [shape: f32[16,128], index: 0, kind: input, shape index: {}]
  %s1 = inlined_call_operand.vmem [shape: f32[128,128], index: 1, kind: input, shape index: {}]
  %s2 = inlined_call_operand.vmem [shape: f32[16,128], index: 2, kind: output, shape index: {}]
  %s3 = sld [smem:[#allocation0]]
  $region22: #{dist_linear.3} parent=0
    _
  %s5 = ssub.s32 1, %s3
  %s6 = scalar_select 0, %s5, %s3
  // Predicated region
  $region2: #{dist_linear.3} parent=0 // pred_check
    _
  $region3: #{dist_linear.3} parent=0 // pred_check_branch
    %8 = sbr.rel (0) target = $region5
  $region4: #{dist_linear.3} parent=0 // pred_region
    _
  $region5: #{dist_linear.3} parent=0 // pred_fallthru
    _
  // Predicated region
  $region6: #{dist_linear.3} parent=0 // pred_check
    _
  $region7: #{dist_linear.3} parent=0 // pred_check_branch
    %10 = sbr.rel (0) target = $region9
  $region8: #{dist_linear.3} parent=0 // pred_region
    _
  $region9: #{dist_linear.3} parent=0 // pred_fallthru
    _
  %p11 = scmp.eq.s32.totalorder 0, 0
  // Predicated region
  $region10: #{dist_linear.3} parent=0 // pred_check
    %p12 = pneg %p11
  $region11: #{dist_linear.3} parent=0 // pred_check_branch
    %14 = sbr.rel (%p12) target = $region13
  $region12: #{dist_linear.3} parent=0 // pred_region
    %15 = vst [vmem:[%s2] sm:$0xff] 0.0
    %16 = vst [vmem:[%s2 + $0x8] sm:$0xff] 0.0
  $region13: #{dist_linear.3} parent=0 // pred_fallthru
    _
  %v17 = vld [vmem:[%s2] sm:$0xff]
  %v18 = vld [vmem:[%s2 + $0x8] sm:$0xff]
  %v19 = vld [vmem:[%s0] sm:$0xff]
  %v20 = vld [vmem:[%s0 + $0x8] sm:$0xff]
  %v21 = vld [vmem:[%s1] sm:$0xff]
  %v22 = vld [vmem:[%s1 + $0x8] sm:$0xff]
  %v23 = vld [vmem:[%s1 + $0x10] sm:$0xff]
  %v24 = vld [vmem:[%s1 + $0x18] sm:$0xff]
  %v25 = vld [vmem:[%s1 + $0x20] sm:$0xff]
  %v26 = vld [vmem:[%s1 + $0x28] sm:$0xff]
  %v27 = vld [vmem:[%s1 + $0x30] sm:$0xff]
  %v28 = vld [vmem:[%s1 + $0x38] sm:$0xff]
  %v29 = vld [vmem:[%s1 + $0x40] sm:$0xff]
  %v30 = vld [vmem:[%s1 + $0x48] sm:$0xff]
  %v31 = vld [vmem:[%s1 + $0x50] sm:$0xff]
  %v32 = vld [vmem:[%s1 + $0x58] sm:$0xff]
  %v33 = vld [vmem:[%s1 + $0x60] sm:$0xff]
  %v34 = vld [vmem:[%s1 + $0x68] sm:$0xff]
  %v35 = vld [vmem:[%s1 + $0x70] sm:$0xff]
  %v36 = vld [vmem:[%s1 + $0x78] sm:$0xff]
  %37 = vmatpush.msra.mxu0 %v36
  %38 = vmatpush.msra.mxu0 %v35
  %39 = vmatpush.msra.mxu0 %v34
  %40 = vmatpush.msra.mxu0 %v33
  %41 = vmatpush.msra.mxu0 %v32
  %42 = vmatpush.msra.mxu0 %v31
  %43 = vmatpush.msra.mxu0 %v30
  %44 = vmatpush.msra.mxu0 %v29
  %45 = vmatpush.msra.mxu0 %v28
  %46 = vmatpush.msra.mxu0 %v27
  %47 = vmatpush.msra.mxu0 %v26
  %48 = vmatpush.msra.mxu0 %v25
  %49 = vmatpush.msra.mxu0 %v24
  %50 = vmatpush.msra.mxu0 %v23
  %51 = vmatpush.msra.mxu0 %v22
  %52 = vmatpush.msra.mxu0 %v21
  %53 = vmatmul.f32.gmra.mxu0 %v19
  %v54 = vpop.f32.mrf.mxu0
  %v55 = vadd.f32 0.0, %v54
  %56 = vmatmul.f32.gmra.mxu0 %v20
  %v57 = vpop.f32.mrf.mxu0
  %v58 = vadd.f32 0.0, %v57
  %59 = vdwg.mxu0
  %v60 = vadd.f32 %v17, %v55
  %v61 = vadd.f32 %v18, %v58
  %62 = vst [vmem:[%s2] sm:$0xff] %v60
  %63 = vst [vmem:[%s2 + $0x8] sm:$0xff] %v61
  // Predicated region
  $region14: #{dist_linear.3} parent=0 // pred_check
    _
  $region15: #{dist_linear.3} parent=0 // pred_check_branch
    %65 = sbr.rel (0) target = $region17
  $region16: #{dist_linear.3} parent=0 // pred_region
    _
  $region17: #{dist_linear.3} parent=0 // pred_fallthru
    _
  // Predicated region
  $region18: #{dist_linear.3} parent=0 // pred_check
    _
  $region19: #{dist_linear.3} parent=0 // pred_check_branch
    %67 = sbr.rel (0) target = $region21
  $region20: #{dist_linear.3} parent=0 // pred_region
    _
  $region21: #{dist_linear.3} parent=0 // pred_fallthru
    _

</llo_original>
